<compile_context>
chip_gen: v6e
topology: v6e:2x2x1
jax: 0.10.0
libtpu: 0.0.40
codegen_flags: <defaults>
</compile_context>

<pallas_src>
import jax
import jax.numpy as jnp
import numpy as np
from jax.experimental import pallas as pl
from jax.experimental.pallas import tpu as pltpu

# ---- small shapes consistent with the module's usage ----
BATCH = 2
SEQ = 8
EMBED = 32
HIDDEN = 32
LANE = 128  # TPU vreg lane width


# --------------------------------------------------------------------------
# fused FeedForward kernel:  o = relu(x @ W1 + b1) @ W2_padded + b2_padded
# --------------------------------------------------------------------------
def feedforward_kernel(x_ref, w1_ref, b1_ref, w2_ref, b2_ref, o_ref):
    # x_ref : (N, E)    float32
    # w1_ref: (E, H)    bfloat16        b1_ref: (1, H)    float32
    # w2_ref: (H, 128)  bfloat16 (cols >= E are zero)
    # b2_ref: (1, 128)  float32  (cols >= E are zero)
    # o_ref : (N, 128)  float32  -> lane-dense, unmasked store
    x = x_ref[...]
    h = jnp.dot(x.astype(jnp.bfloat16), w1_ref[...],
                preferred_element_type=jnp.float32) + b1_ref[...]
    h = jnp.maximum(h, 0.0)                                    # ReLU in f32 (VPU)
    y = jnp.dot(h.astype(jnp.bfloat16), w2_ref[...],
                preferred_element_type=jnp.float32) + b2_ref[...]
    o_ref[...] = y


# --------------------------------------------------------------------------
# wrapper
# --------------------------------------------------------------------------
def _vmem_specs(n):
    return [pl.BlockSpec(memory_space=pltpu.MemorySpace.VMEM) for _ in range(n)]


def feedforward(x, w1, b1, w2, b2):
    """FeedForward forward pass: relu(x @ w1 + b1) @ w2 + b2.

    x: (..., EMBED) float32. w1: (EMBED, HIDDEN), w2: (HIDDEN, EMBED),
    b1: (HIDDEN,), b2: (EMBED,).
    """
    orig_shape = x.shape
    e = orig_shape[-1]
    hdim = w1.shape[1]
    n = int(np.prod(orig_shape[:-1]))
    x2 = x.reshape(n, e)

    # One-time parameter packing (outside the kernel):
    #  - bf16 matmul operands (f32 accumulation happens on the MXU),
    #  - second projection zero-padded to 128 output lanes so the kernel's
    #    output store is lane-dense instead of a masked 32-lane partial store.
    w1p = w1.astype(jnp.bfloat16)
    b1p = b1.reshape(1, hdim).astype(jnp.float32)
    w2p = jnp.zeros((hdim, LANE), jnp.bfloat16).at[:, :e].set(w2.astype(jnp.bfloat16))
    b2p = jnp.zeros((1, LANE), jnp.float32).at[:, :e].set(
        b2.reshape(1, e).astype(jnp.float32))

    out = pl.pallas_call(
        feedforward_kernel,
        out_shape=jax.ShapeDtypeStruct((n, LANE), jnp.float32),
        in_specs=_vmem_specs(5),
        out_specs=pl.BlockSpec(memory_space=pltpu.MemorySpace.VMEM),
    )(x2, w1p, b1p, w2p, b2p)

    return out[:, :e].reshape(orig_shape)


# --------------------------------------------------------------------------
# main: deterministic inputs, run once, compare against pure-JAX reference
# --------------------------------------------------------------------------
if __name__ == "__main__":
    key = jax.random.PRNGKey(0)
    kx, k1, k2, k3, k4 = jax.random.split(key, 5)

    x = jax.random.normal(kx, (BATCH, SEQ, EMBED), jnp.float32)
    w1 = (0.1 * jax.random.normal(k1, (EMBED, HIDDEN))).astype(jnp.float32)
    b1 = (0.1 * jax.random.normal(k2, (HIDDEN,))).astype(jnp.float32)
    w2 = (0.1 * jax.random.normal(k3, (HIDDEN, EMBED))).astype(jnp.float32)
    b2 = (0.1 * jax.random.normal(k4, (EMBED,))).astype(jnp.float32)

    y = feedforward(x, w1, b1, w2, b2)
    jax.block_until_ready(y)

    # pure-JAX f32 reference (mirrors the PyTorch forward)
    ref = jnp.maximum(x @ w1 + b1, 0.0) @ w2 + b2
    np.testing.assert_allclose(np.asarray(y), np.asarray(ref),
                               atol=2e-2, rtol=2e-2)

    print("KERNEL_OK")
</pallas_src>

<mosaic_0001>
module attributes {stable_mosaic.version = 11 : i64} {
  func.func @feedforward_kernel(%arg0: memref<16x32xf32, #tpu.memory_space<vmem>>, %arg1: memref<32x32xbf16, #tpu.memory_space<vmem>>, %arg2: memref<1x32xf32, #tpu.memory_space<vmem>>, %arg3: memref<32x128xbf16, #tpu.memory_space<vmem>>, %arg4: memref<1x128xf32, #tpu.memory_space<vmem>>, %arg5: memref<16x128xf32, #tpu.memory_space<vmem>>) attributes {dimension_semantics = [], scalar_prefetch = 0 : i64, scratch_operands = 0 : i64, tpu.core_type = #tpu.core_type<tc>} {
    %c0 = arith.constant 0 : index
    %c0_0 = arith.constant 0 : index
    %0 = vector.load %arg0[%c0, %c0_0] : memref<16x32xf32, #tpu.memory_space<vmem>>, vector<16x32xf32>
    %1 = arith.truncf %0 : vector<16x32xf32> to vector<16x32xbf16>
    %c0_1 = arith.constant 0 : index
    %c0_2 = arith.constant 0 : index
    %2 = vector.load %arg1[%c0_1, %c0_2] : memref<32x32xbf16, #tpu.memory_space<vmem>>, vector<32x32xbf16>
    %cst = arith.constant dense<0.000000e+00> : vector<16x32xf32>
    %3 = tpu.matmul %1, %2, %cst {dimension_numbers = #tpu.dot_dimension_numbers<[1], [0], [0], [1], [0, 0, 1, 1], [], []>} : vector<16x32xbf16>, vector<32x32xbf16>, vector<16x32xf32> -> vector<16x32xf32>
    %c0_3 = arith.constant 0 : index
    %c0_4 = arith.constant 0 : index
    %4 = vector.load %arg2[%c0_3, %c0_4] : memref<1x32xf32, #tpu.memory_space<vmem>>, vector<1x32xf32>
    %5 = vector.broadcast %4 : vector<1x32xf32> to vector<16x32xf32>
    %6 = arith.addf %3, %5 : vector<16x32xf32>
    %cst_5 = arith.constant 0.000000e+00 : f32
    %7 = vector.broadcast %cst_5 : f32 to vector<16x32xf32>
    %8 = arith.maximumf %6, %7 : vector<16x32xf32>
    %9 = arith.truncf %8 : vector<16x32xf32> to vector<16x32xbf16>
    %c0_6 = arith.constant 0 : index
    %c0_7 = arith.constant 0 : index
    %10 = vector.load %arg3[%c0_6, %c0_7] : memref<32x128xbf16, #tpu.memory_space<vmem>>, vector<32x128xbf16>
    %cst_8 = arith.constant dense<0.000000e+00> : vector<16x128xf32>
    %11 = tpu.matmul %9, %10, %cst_8 {dimension_numbers = #tpu.dot_dimension_numbers<[1], [0], [0], [1], [0, 0, 1, 1], [], []>} : vector<16x32xbf16>, vector<32x128xbf16>, vector<16x128xf32> -> vector<16x128xf32>
    %c0_9 = arith.constant 0 : index
    %c0_10 = arith.constant 0 : index
    %12 = vector.load %arg4[%c0_9, %c0_10] : memref<1x128xf32, #tpu.memory_space<vmem>>, vector<1x128xf32>
    %13 = vector.broadcast %12 : vector<1x128xf32> to vector<16x128xf32>
    %14 = arith.addf %11, %13 : vector<16x128xf32>
    %c0_11 = arith.constant 0 : index
    %c0_12 = arith.constant 0 : index
    %15 = vector.load %arg5[%c0_11, %c0_12] : memref<16x128xf32, #tpu.memory_space<vmem>>, vector<16x128xf32>
    tpu.vector_store %arg5[%c0_11, %c0_12], %14 {strides = array<i32>} : memref<16x128xf32, #tpu.memory_space<vmem>>, vector<16x128xf32>,
    return
  }
}

</mosaic_0001>

<llo_original>
// kernel: tpu_custom_call.1
$region0: #{tpu_custom_call.1}
  #allocation0 [shape = 'u32[]', space=smem, size = 0x4, offset = 0x4, fixed_abs, tag = 'smem constant byte address 0x4 - core index']
  #allocation1 [shape = 'u32[144,128]{1,0:T(1,128)}', space=vmem, size = 0x12000, scoped, tag = 'internal scratch']
  %s0 = inlined_call_operand.hbm [shape: f32[16,32], index: 0, kind: input, shape index: {}]
  %s1 = inlined_call_operand.hbm [shape: bf16[32,32], index: 1, kind: input, shape index: {}]
  %s2 = inlined_call_operand.vmem [shape: f32[1,32], index: 2, kind: input, shape index: {}]
  %s3 = inlined_call_operand.hbm [shape: bf16[32,128], index: 3, kind: input, shape index: {}]
  %s4 = inlined_call_operand.vmem [shape: f32[1,128], index: 4, kind: input, shape index: {}]
  %s5 = inlined_call_operand.hbm [shape: f32[16,128], index: 5, kind: output, shape index: {}]
  %s6 = sld [smem:[#allocation0]]
  $region42: #{tpu_custom_call.1} parent=0
    _
  %s8 = ssub.s32 1, %s6
  %s9 = scalar_select 0, %s8, %s6
  $region1: #{tpu_custom_call.1} parent=0
    #allocation2 [shape = 'u8[8192]{0}', space=vmem, size = 0x2000, scoped, tag = 'input window, operand 0, single buffered']
    #allocation3 [shape = 's32[1]{0}', space=sflag, size = 0x4, scoped, tag = 'scoped memory for tpu_custom_call.1']
    #allocation4 [shape = 's32[1]{0}', space=sflag, size = 0x4, scoped, tag = 'scoped memory for tpu_custom_call.1']
    #allocation5 [shape = 'u8[8192]{0}', space=vmem, size = 0x2000, scoped, tag = 'input window, operand 1, single buffered']
    #allocation6 [shape = 's32[1]{0}', space=sflag, size = 0x4, scoped, tag = 'scoped memory for tpu_custom_call.1']
    #allocation7 [shape = 'u8[8192]{0}', space=vmem, size = 0x2000, scoped, tag = 'input window, operand 3, single buffered']
    #allocation8 [shape = 'u8[8192]{0}', space=vmem, size = 0x2000, scoped, tag = 'output window, operand 0, single buffered']
    %10 = vsyncpa [#allocation3], 0
    %11 = vsyncpa [#allocation6], 0
    %12 = vsyncpa [#allocation4], 0
    // Predicated region
    $region2: #{tpu_custom_call.1} parent=1 // pred_check
      _
    $region3: #{tpu_custom_call.1} parent=1 // pred_check_branch
      %14 = sbr.rel (0) target = $region5
    $region4: #{tpu_custom_call.1} parent=1 // pred_region
      %s16 = ssub.s32 256, 256
      %17 = vsyncadd [#allocation3], %s16
      %s18 = sshll.u32 [#allocation2], 4
      %s19 = int_to_ptr.vmem [resolvable:$true] %s18
      %24 = dma.hbm_to_vmem [thread:$0]  %s0, 256, %s19, [#allocation3], 128, 128, 8
    $region5: #{tpu_custom_call.1} parent=1 // pred_fallthru
      _
    // Predicated region
    $region6: #{tpu_custom_call.1} parent=1 // pred_check
      _
    $region7: #{tpu_custom_call.1} parent=1 // pred_check_branch
      %26 = sbr.rel (0) target = $region9
    $region8: #{tpu_custom_call.1} parent=1 // pred_region
      %s28 = ssub.s32 256, 256
      %29 = vsyncadd [#allocation6], %s28
      %s30 = sshll.u32 [#allocation5], 4
      %s31 = int_to_ptr.vmem [resolvable:$true] %s30
      %36 = dma.hbm_to_vmem [thread:$0]  %s1, 256, %s31, [#allocation6], 64, 64, 4
    $region9: #{tpu_custom_call.1} parent=1 // pred_fallthru
      _
    // Predicated region
    $region10: #{tpu_custom_call.1} parent=1 // pred_check
      _
    $region11: #{tpu_custom_call.1} parent=1 // pred_check_branch
      %38 = sbr.rel (0) target = $region13
    $region12: #{tpu_custom_call.1} parent=1 // pred_region
      _
    $region13: #{tpu_custom_call.1} parent=1 // pred_fallthru
      _
    // Predicated region
    $region14: #{tpu_custom_call.1} parent=1 // pred_check
      _
    $region15: #{tpu_custom_call.1} parent=1 // pred_check_branch
      %40 = sbr.rel (0) target = $region17
    $region16: #{tpu_custom_call.1} parent=1 // pred_region
      %s42 = ssub.s32 256, 256
      %43 = vsyncadd [#allocation6], %s42
      %s44 = sshll.u32 [#allocation7], 4
      %s45 = int_to_ptr.vmem [resolvable:$true] %s44
      %50 = dma.hbm_to_vmem [thread:$0]  %s3, 256, %s45, [#allocation6], 64, 64, 4
    $region17: #{tpu_custom_call.1} parent=1 // pred_fallthru
      _
    // Predicated region
    $region18: #{tpu_custom_call.1} parent=1 // pred_check
      _
    $region19: #{tpu_custom_call.1} parent=1 // pred_check_branch
      %52 = sbr.rel (0) target = $region21
    $region20: #{tpu_custom_call.1} parent=1 // pred_region
      _
    $region21: #{tpu_custom_call.1} parent=1 // pred_fallthru
      _
    // Predicated region
    $region22: #{tpu_custom_call.1} parent=1 // pred_check
      _
    $region23: #{tpu_custom_call.1} parent=1 // pred_check_branch
      %54 = sbr.rel (0) target = $region25
    $region24: #{tpu_custom_call.1} parent=1 // pred_region
      %55 = dma.done [#allocation3], 256
    $region25: #{tpu_custom_call.1} parent=1 // pred_fallthru
      _
    // Predicated region
    $region26: #{tpu_custom_call.1} parent=1 // pred_check
      _
    $region27: #{tpu_custom_call.1} parent=1 // pred_check_branch
      %57 = sbr.rel (0) target = $region29
    $region28: #{tpu_custom_call.1} parent=1 // pred_region
      %58 = dma.done [#allocation6], 256
    $region29: #{tpu_custom_call.1} parent=1 // pred_fallthru
      _
    // Predicated region
    $region30: #{tpu_custom_call.1} parent=1 // pred_check
      _
    $region31: #{tpu_custom_call.1} parent=1 // pred_check_branch
      %60 = sbr.rel (0) target = $region33
    $region32: #{tpu_custom_call.1} parent=1 // pred_region
      %61 = dma.done [#allocation6], 256
    $region33: #{tpu_custom_call.1} parent=1 // pred_fallthru
      _
    %v63 = vld [vmem:[#allocation2] sm:$0xff]
    %v64 = vld [vmem:[#allocation2 + $0x8] sm:$0xff]
    %v65 = vpack.c.bf16 %v64, %v63
    %v66 = vld [vmem:[#allocation5] sm:$0xf]
    %v67 = vld [vmem:[#allocation5 + $0x4] sm:$0xf]
    %v68 = vld [vmem:[#allocation5 + $0x8] sm:$0xf]
    %v69 = vld [vmem:[#allocation5 + $0xc] sm:$0xf]
    %v70 = vld [vmem:[%s2] sm:$0x1]
    %v72 = vlaneseq
    %v73 = vshrl.u32 %v72, 7
    %v74 = vsub.s32 0, %v73
    %v75 = vrot.slane %v70, %v74
    %v81 = vunpack.c.l.b16 %v66
    %v82 = vunpack.c.l.b16 %v67
    %v83 = vunpack.c.l.b16 %v68
    %v84 = vunpack.c.l.b16 %v69
    %v85 = vpack.c.b16 %v82, %v81
    %v86 = vpack.c.b16 %v84, %v83
    %vm89 = vcmask 261120
    %v91 = vsel %vm89, %v65, 0
    %93 = vmatprep.subr.bf16.mxu0 0
    %94 = vmatpush1.bf16.msra.mxu0 0
    %95 = vmatprep.subr.bf16.mxu0 0
    %96 = vmatpush1.bf16.msra.mxu0 0
    %97 = vmatprep.subr.bf16.mxu0 0
    %98 = vmatpush1.bf16.msra.mxu0 0
    %99 = vmatprep.subr.bf16.mxu0 0
    %100 = vmatpush1.bf16.msra.mxu0 0
    %101 = vmatprep.subr.bf16.mxu0 0
    %102 = vmatpush1.bf16.msra.mxu0 0
    %103 = vmatprep.subr.bf16.mxu0 0
    %104 = vmatpush1.bf16.msra.mxu0 0
    %105 = vmatprep.subr.bf16.mxu0 0
    %106 = vmatpush1.bf16.msra.mxu0 %v86
    %107 = vmatprep.subr.bf16.mxu0 0
    %108 = vmatpush1.bf16.msra.mxu0 %v85
    %109 = vmatprep.subr.bf16.mxu0 0
    %110 = vmatpush2.bf16.msra.mxu0 0
    %111 = vmatprep.subr.bf16.mxu0 0
    %112 = vmatpush2.bf16.msra.mxu0 0
    %113 = vmatprep.subr.bf16.mxu0 0
    %114 = vmatpush2.bf16.msra.mxu0 0
    %115 = vmatprep.subr.bf16.mxu0 0
    %116 = vmatpush2.bf16.msra.mxu0 0
    %117 = vmatprep.subr.bf16.mxu0 0
    %118 = vmatpush2.bf16.msra.mxu0 0
    %119 = vmatprep.subr.bf16.mxu0 0
    %120 = vmatpush2.bf16.msra.mxu0 0
    %121 = vmatprep.subr.bf16.mxu0 0
    %122 = vmatpush2.bf16.msra.mxu0 0
    %123 = vmatprep.subr.bf16.mxu0 0
    %124 = vmatpush2.bf16.msra.mxu0 0
    %125 = vmatprep.mubr.bf16.mxu0 0
    %126 = vmatmul.mubr.bf16.gmra.mxu0 %v91
    %v127 = vpop.f32.mrf.mxu0
    %v128 = vadd.f32 %v75, %v127
    %v129 = vpop.f32.mrf.mxu0
    %v130 = vpop.f32.mrf.mxu0
    %v131 = vadd.f32 %v75, %v130
    %v132 = vpop.f32.mrf.mxu0
    %133 = vdwg.mxu0
    %v134 = vmax.f32 %v128, 0.0
    %v135 = vmax.f32 %v131, 0.0
    %v136 = vpack.c.bf16 %v135, %v134
    %v137 = vld [vmem:[#allocation7] sm:$0xf]
    %v138 = vld [vmem:[#allocation7 + $0x4] sm:$0xf]
    %v139 = vld [vmem:[#allocation7 + $0x8] sm:$0xf]
    %v140 = vld [vmem:[#allocation7 + $0xc] sm:$0xf]
    %v141 = vld [vmem:[%s4] sm:$0x1]
    %v143 = vlaneseq
    %v144 = vshrl.u32 %v143, 7
    %v145 = vsub.s32 0, %v144
    %v146 = vrot.slane %v141, %v145
    %v152 = vunpack.c.l.b16 %v137
    %v153 = vunpack.c.l.b16 %v138
    %v154 = vunpack.c.l.b16 %v139
    %v155 = vunpack.c.l.b16 %v140
    %v156 = vpack.c.b16 %v153, %v152
    %v157 = vpack.c.b16 %v155, %v154
    %v161 = vsel %vm89, %v136, 0
    %163 = vmatprep.subr.bf16.mxu0 0
    %164 = vmatpush1.bf16.msra.mxu0 0
    %165 = vmatprep.subr.bf16.mxu0 0
    %166 = vmatpush1.bf16.msra.mxu0 0
    %167 = vmatprep.subr.bf16.mxu0 0
    %168 = vmatpush1.bf16.msra.mxu0 0
    %169 = vmatprep.subr.bf16.mxu0 0
    %170 = vmatpush1.bf16.msra.mxu0 0
    %171 = vmatprep.subr.bf16.mxu0 0
    %172 = vmatpush1.bf16.msra.mxu0 0
    %173 = vmatprep.subr.bf16.mxu0 0
    %174 = vmatpush1.bf16.msra.mxu0 0
    %175 = vmatprep.subr.bf16.mxu0 0
    %176 = vmatpush1.bf16.msra.mxu0 %v157
    %177 = vmatprep.subr.bf16.mxu0 0
    %178 = vmatpush1.bf16.msra.mxu0 %v156
    %179 = vmatprep.subr.bf16.mxu0 0
    %180 = vmatpush2.bf16.msra.mxu0 0
    %181 = vmatprep.subr.bf16.mxu0 0
    %182 = vmatpush2.bf16.msra.mxu0 0
    %183 = vmatprep.subr.bf16.mxu0 0
    %184 = vmatpush2.bf16.msra.mxu0 0
    %185 = vmatprep.subr.bf16.mxu0 0
    %186 = vmatpush2.bf16.msra.mxu0 0
    %187 = vmatprep.subr.bf16.mxu0 0
    %188 = vmatpush2.bf16.msra.mxu0 0
    %189 = vmatprep.subr.bf16.mxu0 0
    %190 = vmatpush2.bf16.msra.mxu0 0
    %191 = vmatprep.subr.bf16.mxu0 0
    %192 = vmatpush2.bf16.msra.mxu0 0
    %193 = vmatprep.subr.bf16.mxu0 0
    %194 = vmatpush2.bf16.msra.mxu0 0
    %195 = vmatprep.mubr.bf16.mxu0 0
    %196 = vmatmul.mubr.bf16.gmra.mxu0 %v161
    %v197 = vpop.f32.mrf.mxu0
    %v198 = vadd.f32 %v146, %v197
    %v199 = vpop.f32.mrf.mxu0
    %v200 = vpop.f32.mrf.mxu0
    %v201 = vadd.f32 %v146, %v200
    %v202 = vpop.f32.mrf.mxu0
    %203 = vdwg.mxu0
    %204 = vst [vmem:[#allocation8] sm:$0xff] %v198
    %205 = vst [vmem:[#allocation8 + $0x8] sm:$0xff] %v201
    // Predicated region
    $region34: #{tpu_custom_call.1} parent=1 // pred_check
      _
    $region35: #{tpu_custom_call.1} parent=1 // pred_check_branch
      %207 = sbr.rel (0) target = $region37
    $region36: #{tpu_custom_call.1} parent=1 // pred_region
      %s209 = ssub.s32 256, 256
      %210 = vsyncadd [#allocation4], %s209
      %s211 = sshll.u32 [#allocation8], 4
      %s212 = int_to_ptr.vmem [resolvable:$true] %s211
      %217 = dma.vmem_to_hbm [thread:$0]  %s212, 256, %s5, [#allocation4], 128, 128, 8
    $region37: #{tpu_custom_call.1} parent=1 // pred_fallthru
      _
    // Predicated region
    $region38: #{tpu_custom_call.1} parent=1 // pred_check
      _
    $region39: #{tpu_custom_call.1} parent=1 // pred_check_branch
      %219 = sbr.rel (0) target = $region41
    $region40: #{tpu_custom_call.1} parent=1 // pred_region
      %220 = dma.done [#allocation4], 256
    $region41: #{tpu_custom_call.1} parent=1 // pred_fallthru
      _
    %221 = vsyncpa [#allocation3], 1
    %222 = vsyncpa [#allocation6], 1
    %223 = vsyncpa [#allocation4], 1

</llo_original>
